<compile_context>
chip_gen: v7x
topology: tpu7x:2x2x1
jax: 0.10.0
libtpu: 0.0.40
codegen_flags: <defaults>
</compile_context>

<pallas_src>
import functools

import jax
import jax.numpy as jnp
from jax.experimental import pallas as pl
from jax.experimental.pallas import tpu as pltpu


def _round_up(x, m):
    return ((x + m - 1) // m) * m


def _cdiv(a, b):
    return (a + b - 1) // b


def _vmem_capacity_bytes():
    """Per-core VMEM capacity, clamped to a sane range; v7x-safe fallback."""
    try:
        cap = int(pltpu.get_tpu_info().vmem_capacity_bytes)
    except Exception:
        cap = 64 * 1024 * 1024
    return min(max(cap, 32 * 1024 * 1024), 128 * 1024 * 1024)


def _encoder_kernel(x_ref, cw_hbm, cb_ref, fw_hbm, fb_ref, out_ref,
                    concat_ref, pad_ref, cw_vmem, fw_vmem, w_sem,
                    *, n_layers, ksize, pad_l, t_real, t_pad, d_pad, halo):
    """One batch-block (rows = BB * T_pad flattened (batch, time) rows) per step.

    x_ref      : (rows, d_pad)          bf16 embedded tokens (lane-dense, zero padded)
    cw_hbm     : (L, K*d_pad, d_pad)    bf16 fused conv weights, left in HBM (pl.ANY)
    cb_ref     : (L, 1, d_pad)          f32 conv biases
    fw_hbm     : (d_pad, v_pad)         bf16 fc weight, left in HBM (pl.ANY)
    fb_ref     : (1, v_pad)             f32 fc bias
    out_ref    : (rows, v_pad)          f32 logits (lane-dense)
    concat_ref : (rows, K*d_pad)        bf16 scratch — shifted-concat activations
    pad_ref    : (2*halo+rows, d_pad)   bf16 scratch — haloed activation for the taps
    cw_vmem / fw_vmem : single-buffered VMEM-resident copies of the big weights
    w_sem      : DMA semaphores for the L+1 weight copies
    """
    rows = x_ref.shape[0]
    first_step = pl.program_id(1) == 0

    # Kick off all resident-weight DMAs once per core chunk; each is waited on
    # right before its first use so the concat build / earlier layers hide it.
    @pl.when(first_step)
    def _start_weight_dmas():
        for l in range(n_layers):
            pltpu.make_async_copy(cw_hbm.at[l], cw_vmem.at[l], w_sem.at[l]).start()
        pltpu.make_async_copy(fw_hbm, fw_vmem, w_sem.at[n_layers]).start()

    shifts = [pad_l - k for k in range(ksize)]

    # Hoisted per-tap validity masks (depend only on the row's time index, not
    # on the layer): valid iff source time index (t - s) lies in [0, T).
    masks = {}
    if ksize > 1:
        t_idx = jax.lax.broadcasted_iota(jnp.int32, (rows, d_pad), 0) % t_pad
        for s in shifts:
            if s != 0:
                masks[s] = ((t_idx >= s) & (t_idx < t_real + s)).astype(jnp.bfloat16)
        if halo > 0:
            # Zero the halo rows (so the mask-multiply never touches garbage).
            zeros_halo = jnp.zeros((halo, d_pad), jnp.bfloat16)
            pad_ref[0:halo, :] = zeros_halo
            pad_ref[halo + rows:2 * halo + rows, :] = zeros_halo

    act = x_ref[...]                                           # bf16 (rows, d_pad)

    # TODO(synk): for n_layers >~ 8 convert this static unroll to lax.fori_loop
    #             with dynamic cw_vmem[l]/cb_ref[l] indexing to bound vreg pressure.
    for l in range(n_layers):
        # Build the (rows, K*d_pad) shifted concat -> ONE fused MXU matmul per
        # layer instead of K small (rows, D) @ (D, D) matmuls.
        if ksize > 1:
            pad_ref[halo:halo + rows, :] = act                 # 8-aligned bf16 write
        for k in range(ksize):
            s = shifts[k]                                      # row shift of tap k
            cols = slice(k * d_pad, (k + 1) * d_pad)           # lane-aligned block
            if s == 0:
                concat_ref[:, cols] = act
            else:
                win = pad_ref[halo - s:halo - s + rows, :]     # act[r - s]
                concat_ref[:, cols] = win * masks[s]           # bf16 0/1 mask

        @pl.when(first_step)
        def _wait_cw(l=l):                                     # noqa: B023
            pltpu.make_async_copy(cw_hbm.at[l], cw_vmem.at[l], w_sem.at[l]).wait()

        acc = jnp.dot(concat_ref[...], cw_vmem[l],
                      preferred_element_type=jnp.float32)      # (rows, d_pad) f32
        acc = acc + cb_ref[l]                                  # (1, d_pad) broadcast
        # Dropout(p=0.0) is identity.
        # TODO(synk): exact erf GELU not used; tanh approximation instead.
        act = jax.nn.gelu(acc, approximate=True).astype(jnp.bfloat16)

    @pl.when(first_step)
    def _wait_fw():
        pltpu.make_async_copy(fw_hbm, fw_vmem, w_sem.at[n_layers]).wait()

    # Final Linear: (rows, d_pad) @ (d_pad, v_pad) + (1, v_pad)
    out_ref[...] = (jnp.dot(act, fw_vmem[...],
                            preferred_element_type=jnp.float32)
                    + fb_ref[...]).astype(out_ref.dtype)


def conv_encoder_forward(tokens, emb, conv_w, conv_b, fc_w, fc_b, *, kernel_size):
    """tokens: (B, T) int32.  Returns (B, T, vocab_size) float32 logits."""
    B, T = tokens.shape
    D = emb.shape[1]
    V = fc_w.shape[1]
    L = conv_w.shape[0]
    K = kernel_size
    pad_l = (K - 1) // 2                       # torch 'same' left padding

    # Lane/sublane-dense padded sizes.
    Dp = _round_up(max(D, 128), 128)
    Vp = _round_up(max(V, 128), 128)
    Tp = _round_up(T, 8)

    halo = max(pad_l, K - 1 - pad_l)
    halo = _round_up(halo, 8) if halo > 0 else 0

    vmem_cap = _vmem_capacity_bytes()

    def _vmem_est(bb):
        r = bb * Tp
        return (2 * r * Dp * 2            # x blocks (double buffered, bf16)
                + 2 * r * Vp * 4          # output blocks (double buffered, f32)
                + r * K * Dp * 2          # shifted-concat scratch (bf16)
                + (2 * halo + r) * Dp * 2 # haloed activation scratch (bf16)
                + L * K * Dp * Dp * 2     # resident conv weights (single buffer)
                + Dp * Vp * 2             # resident fc weight (single buffer)
                + (K + 3) * r * Dp * 2    # masks + live act temps (slack)
                + 2 * (L * Dp + Vp) * 4   # biases
                + (2 << 20))              # compiler headroom

    # Target ~1024 matmul rows per grid step (measured pipeline efficiency
    # ~85% vs ~63% at 256 rows), shrunk until the step fits the VMEM budget.
    target_rows = 1024
    BB = max(1, min(B, target_rows // Tp if Tp <= target_rows else 1))
    budget = int(0.45 * vmem_cap)
    while BB > 1 and _vmem_est(BB) > budget:
        BB -= 1

    G = _cdiv(B, BB)
    P = 2 if G >= 2 else 1                 # leading parallel axis (v7x megacore)
    Gp = _cdiv(G, P)
    Bp = P * Gp * BB
    rows = BB * Tp

    # ---- glue done in plain XLA: embedding gather + padding, all in bf16 ----
    emb_p = jnp.pad(emb, ((0, 0), (0, Dp - D))).astype(jnp.bfloat16)
    tok_p = jnp.pad(tokens, ((0, Bp - B), (0, 0)))
    x = jnp.take(emb_p, tok_p, axis=0)                          # (Bp, T, Dp) bf16
    x = jnp.pad(x, ((0, 0), (0, Tp - T), (0, 0)))               # (Bp, Tp, Dp)
    x = x.reshape(Bp * Tp, Dp)                                  # lane-dense bf16 slab

    # Fused conv weights: (L, K, D, D) -> (L, K*Dp, Dp) so each layer is one
    # (rows, K*Dp) @ (K*Dp, Dp) matmul.  bf16 operands, f32 accumulation.
    cw = jnp.pad(conv_w, ((0, 0), (0, 0), (0, Dp - D), (0, Dp - D)))
    cw = cw.reshape(L, K * Dp, Dp).astype(jnp.bfloat16)
    cb = jnp.pad(conv_b, ((0, 0), (0, 0), (0, Dp - D))).astype(jnp.float32)
    fw = jnp.pad(fc_w, ((0, Dp - D), (0, Vp - V))).astype(jnp.bfloat16)
    fb = jnp.pad(fc_b, ((0, 0), (0, Vp - V))).astype(jnp.float32)

    kern = functools.partial(
        _encoder_kernel, n_layers=L, ksize=K, pad_l=pad_l,
        t_real=T, t_pad=Tp, d_pad=Dp, halo=halo)

    # Generation-aware scoped-VMEM limit: never exceed 7/8 of physical VMEM
    # (v7x has only 64 MiB per core), never below a safe 32 MiB floor.
    est = _vmem_est(BB)
    vmem_limit = int(min(vmem_cap * 7 // 8,
                         max(32 * 1024 * 1024, int(1.3 * est) + (2 << 20))))

    out = pl.pallas_call(
        kern,
        out_shape=jax.ShapeDtypeStruct((Bp * Tp, Vp), jnp.float32),
        grid_spec=pltpu.PrefetchScalarGridSpec(
            num_scalar_prefetch=0,
            grid=(P, Gp),
            in_specs=[
                pl.BlockSpec((rows, Dp), lambda p, g: (p * Gp + g, 0)),  # activations
                pl.BlockSpec(memory_space=pl.ANY),                       # conv weights (HBM)
                pl.BlockSpec((L, 1, Dp), lambda p, g: (0, 0, 0)),        # conv biases
                pl.BlockSpec(memory_space=pl.ANY),                       # fc weight (HBM)
                pl.BlockSpec((1, Vp), lambda p, g: (0, 0)),              # fc bias
            ],
            out_specs=pl.BlockSpec((rows, Vp), lambda p, g: (p * Gp + g, 0)),
            scratch_shapes=[
                pltpu.VMEM((rows, K * Dp), jnp.bfloat16),        # shifted concat
                pltpu.VMEM((2 * halo + rows, Dp), jnp.bfloat16), # haloed activation
                pltpu.VMEM((L, K * Dp, Dp), jnp.bfloat16),       # resident conv weights
                pltpu.VMEM((Dp, Vp), jnp.bfloat16),              # resident fc weight
                pltpu.SemaphoreType.DMA((L + 1,)),               # weight-copy sems
            ],
        ),
        compiler_params=pltpu.CompilerParams(
            # Leading axis "parallel" so v7x's two TensorCores split the work;
            # the weight residency is reloaded at program_id(1)==0, i.e. once
            # per core chunk, so every core computes with valid weights.
            dimension_semantics=("parallel", "arbitrary"),
            vmem_limit_bytes=vmem_limit),
    )(x, cw, cb, fw, fb)

    return out.reshape(Bp, Tp, Vp)[:B, :T, :V]


def reference_forward(tokens, emb, conv_w, conv_b, fc_w, fc_b, *, kernel_size):
    """Pure-JAX f32 reference of the same math (same tanh-GELU variant)."""
    x = jnp.take(emb, tokens, axis=0).astype(jnp.float32)   # (B, T, D)
    T = x.shape[1]
    pad_l = (kernel_size - 1) // 2
    pad_r = kernel_size - 1 - pad_l
    for l in range(conv_w.shape[0]):
        xp = jnp.pad(x, ((0, 0), (pad_l, pad_r), (0, 0)))
        y = jnp.zeros_like(x)
        for k in range(kernel_size):
            y = y + xp[:, k:k + T, :] @ conv_w[l, k]
        y = y + conv_b[l]
        x = jax.nn.gelu(y, approximate=True)
    return x @ fc_w + fc_b


if __name__ == "__main__":
    # Small shapes consistent with the module.
    B, T = 2, 16
    model_dim, kernel_size, n_layers, vocab_size = 32, 3, 2, 10

    key = jax.random.PRNGKey(0)
    k_tok, k_emb, k_cw, k_cb, k_fw, k_fb = jax.random.split(key, 6)

    tokens = jax.random.randint(k_tok, (B, T), 0, vocab_size + 1, dtype=jnp.int32)
    # Parameters (deterministic, synthetic — shapes per ConvEncoder.__init__).
    emb = 0.1 * jax.random.normal(k_emb, (vocab_size + 1, model_dim), jnp.float32)
    # torch Conv1d weight is (out, in, K); stored here as (L, K, in, out) so y = x @ W[l, k]
    conv_w = 0.1 * jax.random.normal(
        k_cw, (n_layers, kernel_size, model_dim, model_dim), jnp.float32)
    conv_b = 0.1 * jax.random.normal(k_cb, (n_layers, 1, model_dim), jnp.float32)
    # torch Linear weight is (V, D); stored transposed as (D, V)
    fc_w = 0.1 * jax.random.normal(k_fw, (model_dim, vocab_size), jnp.float32)
    fc_b = 0.1 * jax.random.normal(k_fb, (1, vocab_size), jnp.float32)

    out = conv_encoder_forward(tokens, emb, conv_w, conv_b, fc_w, fc_b,
                               kernel_size=kernel_size)
    out = jax.block_until_ready(out)

    ref = reference_forward(tokens, emb, conv_w, conv_b, fc_w, fc_b,
                            kernel_size=kernel_size)
    assert out.shape == (B, T, vocab_size)
    # bf16 MXU operands / bf16 inter-layer activations with f32 accumulation.
    assert jnp.allclose(out, ref, atol=2e-2, rtol=2e-2), "mismatch vs JAX reference"

    print("KERNEL_OK")
</pallas_src>

<mosaic_0001>
module attributes {stable_mosaic.version = 11 : i64} {
  func.func @_encoder_kernel(%arg0: i32, %arg1: i32, %arg2: memref<32x128xbf16, #tpu.memory_space<vmem>>, %arg3: memref<2x384x128xbf16, #tpu.memory_space<any>>, %arg4: memref<2x1x128xf32, #tpu.memory_space<vmem>>, %arg5: memref<128x128xbf16, #tpu.memory_space<any>>, %arg6: memref<1x128xf32, #tpu.memory_space<vmem>>, %arg7: memref<32x128xf32, #tpu.memory_space<vmem>>, %arg8: memref<32x384xbf16, #tpu.memory_space<vmem>>, %arg9: memref<48x128xbf16, #tpu.memory_space<vmem>>, %arg10: memref<2x384x128xbf16, #tpu.memory_space<vmem>>, %arg11: memref<128x128xbf16, #tpu.memory_space<vmem>>, %arg12: memref<3x!tpu.dma_semaphore, #tpu.memory_space<semaphore_mem>>) attributes {dimension_semantics = [#tpu.dimension_semantics<parallel>, #tpu.dimension_semantics<arbitrary>], iteration_bounds = array<i64: 1, 1>, scalar_prefetch = 0 : i64, scratch_operands = 5 : i64, tpu.core_type = #tpu.core_type<tc>, window_params = [{transform_indices = @transform_0, window_bounds = array<i64: 32, 128>}, {}, {pipeline_mode = #tpu.pipeline_mode<synchronous>, transform_indices = @transform_2, window_bounds = array<i64: 2, 1, 128>}, {}, {pipeline_mode = #tpu.pipeline_mode<synchronous>, transform_indices = @transform_4, window_bounds = array<i64: 1, 128>}, {transform_indices = @transform_5, window_bounds = array<i64: 32, 128>}]} {
    %c0_i32 = arith.constant 0 : i32
    %0 = arith.cmpi eq, %arg1, %c0_i32 : i32
    %1 = arith.extui %0 : i1 to i32
    %c0_i32_0 = arith.constant 0 : i32
    %2 = arith.cmpi ne, %1, %c0_i32_0 : i32
    scf.if %2 {
      %c0_i32_64 = arith.constant 0 : i32
      %c0_i32_65 = arith.constant 0 : i32
      %c0_i32_66 = arith.constant 0 : i32
      %c0_i32_67 = arith.constant 0 : i32
      %c0_i32_68 = arith.constant 0 : i32
      %112 = tpu.memref_slice %arg3[%c0_i32_64, %c0_i32_67, %c0_i32_68] : memref<2x384x128xbf16, #tpu.memory_space<any>> -> memref<1x384x128xbf16, #tpu.memory_space<any>>
      %113 = tpu.memref_squeeze %112 : memref<1x384x128xbf16, #tpu.memory_space<any>> -> memref<384x128xbf16, #tpu.memory_space<any>>
      %c0_i32_69 = arith.constant 0 : i32
      %c0_i32_70 = arith.constant 0 : i32
      %114 = tpu.memref_slice %arg10[%c0_i32_65, %c0_i32_69, %c0_i32_70] : memref<2x384x128xbf16, #tpu.memory_space<vmem>> -> memref<1x384x128xbf16, #tpu.memory_space<vmem>>
      %115 = tpu.memref_squeeze %114 : memref<1x384x128xbf16, #tpu.memory_space<vmem>> -> memref<384x128xbf16, #tpu.memory_space<vmem>>
      %116 = tpu.memref_slice %arg12[%c0_i32_66] : memref<3x!tpu.dma_semaphore, #tpu.memory_space<semaphore_mem>> -> memref<1x!tpu.dma_semaphore, #tpu.memory_space<semaphore_mem>>
      %117 = tpu.memref_squeeze %116 : memref<1x!tpu.dma_semaphore, #tpu.memory_space<semaphore_mem>> -> memref<!tpu.dma_semaphore, #tpu.memory_space<semaphore_mem>>
      tpu.enqueue_dma source(%113 : memref<384x128xbf16, #tpu.memory_space<any>>) target(%115 : memref<384x128xbf16, #tpu.memory_space<vmem>>) target_semaphore(%117 : memref<!tpu.dma_semaphore, #tpu.memory_space<semaphore_mem>>)
      %c1_i32_71 = arith.constant 1 : i32
      %c1_i32_72 = arith.constant 1 : i32
      %c1_i32_73 = arith.constant 1 : i32
      %c0_i32_74 = arith.constant 0 : i32
      %c0_i32_75 = arith.constant 0 : i32
      %118 = tpu.memref_slice %arg3[%c1_i32_71, %c0_i32_74, %c0_i32_75] : memref<2x384x128xbf16, #tpu.memory_space<any>> -> memref<1x384x128xbf16, #tpu.memory_space<any>>
      %119 = tpu.memref_squeeze %118 : memref<1x384x128xbf16, #tpu.memory_space<any>> -> memref<384x128xbf16, #tpu.memory_space<any>>
      %c0_i32_76 = arith.constant 0 : i32
      %c0_i32_77 = arith.constant 0 : i32
      %120 = tpu.memref_slice %arg10[%c1_i32_72, %c0_i32_76, %c0_i32_77] : memref<2x384x128xbf16, #tpu.memory_space<vmem>> -> memref<1x384x128xbf16, #tpu.memory_space<vmem>>
      %121 = tpu.memref_squeeze %120 : memref<1x384x128xbf16, #tpu.memory_space<vmem>> -> memref<384x128xbf16, #tpu.memory_space<vmem>>
      %122 = tpu.memref_slice %arg12[%c1_i32_73] : memref<3x!tpu.dma_semaphore, #tpu.memory_space<semaphore_mem>> -> memref<1x!tpu.dma_semaphore, #tpu.memory_space<semaphore_mem>>
      %123 = tpu.memref_squeeze %122 : memref<1x!tpu.dma_semaphore, #tpu.memory_space<semaphore_mem>> -> memref<!tpu.dma_semaphore, #tpu.memory_space<semaphore_mem>>
      tpu.enqueue_dma source(%119 : memref<384x128xbf16, #tpu.memory_space<any>>) target(%121 : memref<384x128xbf16, #tpu.memory_space<vmem>>) target_semaphore(%123 : memref<!tpu.dma_semaphore, #tpu.memory_space<semaphore_mem>>)
      %c2_i32 = arith.constant 2 : i32
      %124 = tpu.memref_slice %arg12[%c2_i32] : memref<3x!tpu.dma_semaphore, #tpu.memory_space<semaphore_mem>> -> memref<1x!tpu.dma_semaphore, #tpu.memory_space<semaphore_mem>>
      %125 = tpu.memref_squeeze %124 : memref<1x!tpu.dma_semaphore, #tpu.memory_space<semaphore_mem>> -> memref<!tpu.dma_semaphore, #tpu.memory_space<semaphore_mem>>
      tpu.enqueue_dma source(%arg5 : memref<128x128xbf16, #tpu.memory_space<any>>) target(%arg11 : memref<128x128xbf16, #tpu.memory_space<vmem>>) target_semaphore(%125 : memref<!tpu.dma_semaphore, #tpu.memory_space<semaphore_mem>>)
    } else {
    }
    %3 = tpu.iota {dimensions = array<i32: 0>} : vector<32x128xi32>
    %c16_i32 = arith.constant 16 : i32
    %c0_i32_1 = arith.constant 0 : i32
    %4 = arith.cmpi eq, %c16_i32, %c0_i32_1 : i32
    %c1_i32 = arith.constant 1 : i32
    %5 = arith.select %4, %c1_i32, %c16_i32 : i32
    %6 = vector.broadcast %5 : i32 to vector<32x128xi32>
    %7 = arith.remsi %3, %6 : vector<32x128xi32>
    %c0_i32_2 = arith.constant 0 : i32
    %8 = vector.broadcast %c0_i32_2 : i32 to vector<32x128xi32>
    %9 = arith.cmpi ne, %7, %8 : vector<32x128xi32>
    %c0_i32_3 = arith.constant 0 : i32
    %10 = vector.broadcast %c0_i32_3 : i32 to vector<32x128xi32>
    %11 = arith.cmpi slt, %7, %10 : vector<32x128xi32>
    %c0_i32_4 = arith.constant 0 : i32
    %12 = arith.cmpi slt, %5, %c0_i32_4 : i32
    %13 = vector.broadcast %12 : i1 to vector<32x128xi1>
    %14 = vector.broadcast %13 : vector<32x128xi1> to vector<32x128xi1>
    %15 = arith.xori %11, %14 : vector<32x128xi1>
    %16 = arith.andi %15, %9 : vector<32x128xi1>
    %17 = vector.broadcast %5 : i32 to vector<32x128xi32>
    %18 = arith.addi %7, %17 : vector<32x128xi32>
    %19 = arith.select %16, %18, %7 : vector<32x128xi1>, vector<32x128xi32>
    %c1_i32_5 = arith.constant 1 : i32
    %20 = vector.broadcast %c1_i32_5 : i32 to vector<32x128xi32>
    %21 = arith.cmpi sge, %19, %20 : vector<32x128xi32>
    %c17_i32 = arith.constant 17 : i32
    %22 = vector.broadcast %c17_i32 : i32 to vector<32x128xi32>
    %23 = arith.cmpi slt, %19, %22 : vector<32x128xi32>
    %24 = arith.andi %21, %23 : vector<32x128xi1>
    %25 = arith.extui %24 : vector<32x128xi1> to vector<32x128xi32>
    %26 = arith.sitofp %25 : vector<32x128xi32> to vector<32x128xf32>
    %27 = arith.truncf %26 : vector<32x128xf32> to vector<32x128xbf16>
    %c-1_i32 = arith.constant -1 : i32
    %28 = vector.broadcast %c-1_i32 : i32 to vector<32x128xi32>
    %29 = arith.cmpi sge, %19, %28 : vector<32x128xi32>
    %c15_i32 = arith.constant 15 : i32
    %30 = vector.broadcast %c15_i32 : i32 to vector<32x128xi32>
    %31 = arith.cmpi slt, %19, %30 : vector<32x128xi32>
    %32 = arith.andi %29, %31 : vector<32x128xi1>
    %33 = arith.extui %32 : vector<32x128xi1> to vector<32x128xi32>
    %34 = arith.sitofp %33 : vector<32x128xi32> to vector<32x128xf32>
    %35 = arith.truncf %34 : vector<32x128xf32> to vector<32x128xbf16>
    %cst = arith.constant 0.000000e+00 : bf16
    %36 = vector.broadcast %cst : bf16 to vector<8x128xbf16>
    %c0 = arith.constant 0 : index
    %c0_6 = arith.constant 0 : index
    %37 = vector.load %arg9[%c0, %c0_6] : memref<48x128xbf16, #tpu.memory_space<vmem>>, vector<8x128xbf16>
    tpu.vector_store %arg9[%c0, %c0_6], %36 {strides = array<i32>} : memref<48x128xbf16, #tpu.memory_space<vmem>>, vector<8x128xbf16>,
    %c40 = arith.constant 40 : index
    %c0_7 = arith.constant 0 : index
    %38 = vector.load %arg9[%c40, %c0_7] : memref<48x128xbf16, #tpu.memory_space<vmem>>, vector<8x128xbf16>
    tpu.vector_store %arg9[%c40, %c0_7], %36 {strides = array<i32>} : memref<48x128xbf16, #tpu.memory_space<vmem>>, vector<8x128xbf16>,
    %c0_8 = arith.constant 0 : index
    %c0_9 = arith.constant 0 : index
    %39 = vector.load %arg2[%c0_8, %c0_9] : memref<32x128xbf16, #tpu.memory_space<vmem>>, vector<32x128xbf16>
    %c8 = arith.constant 8 : index
    %c0_10 = arith.constant 0 : index
    %40 = vector.load %arg9[%c8, %c0_10] : memref<48x128xbf16, #tpu.memory_space<vmem>>, vector<32x128xbf16>
    tpu.vector_store %arg9[%c8, %c0_10], %39 {strides = array<i32>} : memref<48x128xbf16, #tpu.memory_space<vmem>>, vector<32x128xbf16>,
    %c7 = arith.constant 7 : index
    %c0_11 = arith.constant 0 : index
    %41 = vector.load %arg9[%c7, %c0_11] : memref<48x128xbf16, #tpu.memory_space<vmem>>, vector<32x128xbf16>
    %42 = arith.mulf %41, %27 : vector<32x128xbf16>
    %c0_12 = arith.constant 0 : index
    %c0_13 = arith.constant 0 : index
    %43 = vector.load %arg8[%c0_12, %c0_13] : memref<32x384xbf16, #tpu.memory_space<vmem>>, vector<32x128xbf16>
    tpu.vector_store %arg8[%c0_12, %c0_13], %42 {strides = array<i32>} : memref<32x384xbf16, #tpu.memory_space<vmem>>, vector<32x128xbf16>,
    %c0_14 = arith.constant 0 : index
    %c128 = arith.constant 128 : index
    %44 = vector.load %arg8[%c0_14, %c128] : memref<32x384xbf16, #tpu.memory_space<vmem>>, vector<32x128xbf16>
    tpu.vector_store %arg8[%c0_14, %c128], %39 {strides = array<i32>} : memref<32x384xbf16, #tpu.memory_space<vmem>>, vector<32x128xbf16>,
    %c9 = arith.constant 9 : index
    %c0_15 = arith.constant 0 : index
    %45 = vector.load %arg9[%c9, %c0_15] : memref<48x128xbf16, #tpu.memory_space<vmem>>, vector<32x128xbf16>
    %46 = arith.mulf %45, %35 : vector<32x128xbf16>
    %c0_16 = arith.constant 0 : index
    %c256 = arith.constant 256 : index
    %47 = vector.load %arg8[%c0_16, %c256] : memref<32x384xbf16, #tpu.memory_space<vmem>>, vector<32x128xbf16>
    tpu.vector_store %arg8[%c0_16, %c256], %46 {strides = array<i32>} : memref<32x384xbf16, #tpu.memory_space<vmem>>, vector<32x128xbf16>,
    %48 = arith.extui %0 : i1 to i32
    %c0_i32_17 = arith.constant 0 : i32
    %49 = arith.cmpi ne, %48, %c0_i32_17 : i32
    scf.if %49 {
      %c0_i32_64 = arith.constant 0 : i32
      %c0_i32_65 = arith.constant 0 : i32
      %c0_i32_66 = arith.constant 0 : i32
      %c0_i32_67 = arith.constant 0 : i32
      %c0_i32_68 = arith.constant 0 : i32
      %112 = tpu.memref_slice %arg3[%c0_i32_64, %c0_i32_67, %c0_i32_68] : memref<2x384x128xbf16, #tpu.memory_space<any>> -> memref<1x384x128xbf16, #tpu.memory_space<any>>
      %113 = tpu.memref_squeeze %112 : memref<1x384x128xbf16, #tpu.memory_space<any>> -> memref<384x128xbf16, #tpu.memory_space<any>>
      %c0_i32_69 = arith.constant 0 : i32
      %c0_i32_70 = arith.constant 0 : i32
      %114 = tpu.memref_slice %arg10[%c0_i32_65, %c0_i32_69, %c0_i32_70] : memref<2x384x128xbf16, #tpu.memory_space<vmem>> -> memref<1x384x128xbf16, #tpu.memory_space<vmem>>
      %115 = tpu.memref_squeeze %114 : memref<1x384x128xbf16, #tpu.memory_space<vmem>> -> memref<384x128xbf16, #tpu.memory_space<vmem>>
      %116 = tpu.memref_slice %arg12[%c0_i32_66] : memref<3x!tpu.dma_semaphore, #tpu.memory_space<semaphore_mem>> -> memref<1x!tpu.dma_semaphore, #tpu.memory_space<semaphore_mem>>
      %117 = tpu.memref_squeeze %116 : memref<1x!tpu.dma_semaphore, #tpu.memory_space<semaphore_mem>> -> memref<!tpu.dma_semaphore, #tpu.memory_space<semaphore_mem>>
      tpu.wait_dma2 semaphore(%117 : memref<!tpu.dma_semaphore, #tpu.memory_space<semaphore_mem>>) src(%113 : memref<384x128xbf16, #tpu.memory_space<any>>) dst(%115 : memref<384x128xbf16, #tpu.memory_space<vmem>>)
    } else {
    }
    %c0_18 = arith.constant 0 : index
    %c0_19 = arith.constant 0 : index
    %50 = vector.load %arg8[%c0_18, %c0_19] : memref<32x384xbf16, #tpu.memory_space<vmem>>, vector<32x384xbf16>
    %c0_20 = arith.constant 0 : index
    %c0_21 = arith.constant 0 : index
    %c0_22 = arith.constant 0 : index
    %51 = vector.load %arg10[%c0_20, %c0_21, %c0_22] : memref<2x384x128xbf16, #tpu.memory_space<vmem>>, vector<1x384x128xbf16>
    %52 = vector.shape_cast %51 : vector<1x384x128xbf16> to vector<384x128xbf16>
    %cst_23 = arith.constant dense<0.000000e+00> : vector<32x128xf32>
    %53 = tpu.matmul %50, %52, %cst_23 {dimension_numbers = #tpu.dot_dimension_numbers<[1], [0], [0], [1], [0, 0, 1, 1], [], []>} : vector<32x384xbf16>, vector<384x128xbf16>, vector<32x128xf32> -> vector<32x128xf32>
    %c0_24 = arith.constant 0 : index
    %c0_25 = arith.constant 0 : index
    %c0_26 = arith.constant 0 : index
    %54 = vector.load %arg4[%c0_24, %c0_25, %c0_26] : memref<2x1x128xf32, #tpu.memory_space<vmem>>, vector<1x1x128xf32>
    %55 = vector.shape_cast %54 : vector<1x1x128xf32> to vector<1x128xf32>
    %56 = vector.broadcast %55 : vector<1x128xf32> to vector<32x128xf32>
    %57 = arith.addf %53, %56 : vector<32x128xf32>
    %58 = arith.mulf %57, %57 : vector<32x128xf32>
    %59 = arith.mulf %57, %58 : vector<32x128xf32>
    %cst_27 = arith.constant 4.471500e-02 : f32
    %60 = vector.broadcast %cst_27 : f32 to vector<32x128xf32>
    %61 = arith.mulf %60, %59 : vector<32x128xf32>
    %62 = arith.addf %57, %61 : vector<32x128xf32>
    %cst_28 = arith.constant 0.797884583 : f32
    %63 = vector.broadcast %cst_28 : f32 to vector<32x128xf32>
    %64 = arith.mulf %63, %62 : vector<32x128xf32>
    %65 = math.tanh %64 : vector<32x128xf32>
    %cst_29 = arith.constant 1.000000e+00 : f32
    %66 = vector.broadcast %cst_29 : f32 to vector<32x128xf32>
    %67 = arith.addf %66, %65 : vector<32x128xf32>
    %cst_30 = arith.constant 5.000000e-01 : f32
    %68 = vector.broadcast %cst_30 : f32 to vector<32x128xf32>
    %69 = arith.mulf %68, %67 : vector<32x128xf32>
    %70 = arith.mulf %57, %69 : vector<32x128xf32>
    %71 = arith.truncf %70 : vector<32x128xf32> to vector<32x128xbf16>
    %c8_31 = arith.constant 8 : index
    %c0_32 = arith.constant 0 : index
    %72 = vector.load %arg9[%c8_31, %c0_32] : memref<48x128xbf16, #tpu.memory_space<vmem>>, vector<32x128xbf16>
    tpu.vector_store %arg9[%c8_31, %c0_32], %71 {strides = array<i32>} : memref<48x128xbf16, #tpu.memory_space<vmem>>, vector<32x128xbf16>,
    %c7_33 = arith.constant 7 : index
    %c0_34 = arith.constant 0 : index
    %73 = vector.load %arg9[%c7_33, %c0_34] : memref<48x128xbf16, #tpu.memory_space<vmem>>, vector<32x128xbf16>
    %74 = arith.mulf %73, %27 : vector<32x128xbf16>
    %c0_35 = arith.constant 0 : index
    %c0_36 = arith.constant 0 : index
    %75 = vector.load %arg8[%c0_35, %c0_36] : memref<32x384xbf16, #tpu.memory_space<vmem>>, vector<32x128xbf16>
    tpu.vector_store %arg8[%c0_35, %c0_36], %74 {strides = array<i32>} : memref<32x384xbf16, #tpu.memory_space<vmem>>, vector<32x128xbf16>,
    %c0_37 = arith.constant 0 : index
    %c128_38 = arith.constant 128 : index
    %76 = vector.load %arg8[%c0_37, %c128_38] : memref<32x384xbf16, #tpu.memory_space<vmem>>, vector<32x128xbf16>
    tpu.vector_store %arg8[%c0_37, %c128_38], %71 {strides = array<i32>} : memref<32x384xbf16, #tpu.memory_space<vmem>>, vector<32x128xbf16>,
    %c9_39 = arith.constant 9 : index
    %c0_40 = arith.constant 0 : index
    %77 = vector.load %arg9[%c9_39, %c0_40] : memref<48x128xbf16, #tpu.memory_space<vmem>>, vector<32x128xbf16>
    %78 = arith.mulf %77, %35 : vector<32x128xbf16>
    %c0_41 = arith.constant 0 : index
    %c256_42 = arith.constant 256 : index
    %79 = vector.load %arg8[%c0_41, %c256_42] : memref<32x384xbf16, #tpu.memory_space<vmem>>, vector<32x128xbf16>
    tpu.vector_store %arg8[%c0_41, %c256_42], %78 {strides = array<i32>} : memref<32x384xbf16, #tpu.memory_space<vmem>>, vector<32x128xbf16>,
    %80 = arith.extui %0 : i1 to i32
    %c0_i32_43 = arith.constant 0 : i32
    %81 = arith.cmpi ne, %80, %c0_i32_43 : i32
    scf.if %81 {
      %c1_i32_64 = arith.constant 1 : i32
      %c1_i32_65 = arith.constant 1 : i32
      %c1_i32_66 = arith.constant 1 : i32
      %c0_i32_67 = arith.constant 0 : i32
      %c0_i32_68 = arith.constant 0 : i32
      %112 = tpu.memref_slice %arg3[%c1_i32_64, %c0_i32_67, %c0_i32_68] : memref<2x384x128xbf16, #tpu.memory_space<any>> -> memref<1x384x128xbf16, #tpu.memory_space<any>>
      %113 = tpu.memref_squeeze %112 : memref<1x384x128xbf16, #tpu.memory_space<any>> -> memref<384x128xbf16, #tpu.memory_space<any>>
      %c0_i32_69 = arith.constant 0 : i32
      %c0_i32_70 = arith.constant 0 : i32
      %114 = tpu.memref_slice %arg10[%c1_i32_65, %c0_i32_69, %c0_i32_70] : memref<2x384x128xbf16, #tpu.memory_space<vmem>> -> memref<1x384x128xbf16, #tpu.memory_space<vmem>>
      %115 = tpu.memref_squeeze %114 : memref<1x384x128xbf16, #tpu.memory_space<vmem>> -> memref<384x128xbf16, #tpu.memory_space<vmem>>
      %116 = tpu.memref_slice %arg12[%c1_i32_66] : memref<3x!tpu.dma_semaphore, #tpu.memory_space<semaphore_mem>> -> memref<1x!tpu.dma_semaphore, #tpu.memory_space<semaphore_mem>>
      %117 = tpu.memref_squeeze %116 : memref<1x!tpu.dma_semaphore, #tpu.memory_space<semaphore_mem>> -> memref<!tpu.dma_semaphore, #tpu.memory_space<semaphore_mem>>
      tpu.wait_dma2 semaphore(%117 : memref<!tpu.dma_semaphore, #tpu.memory_space<semaphore_mem>>) src(%113 : memref<384x128xbf16, #tpu.memory_space<any>>) dst(%115 : memref<384x128xbf16, #tpu.memory_space<vmem>>)
    } else {
    }
    %c0_44 = arith.constant 0 : index
    %c0_45 = arith.constant 0 : index
    %82 = vector.load %arg8[%c0_44, %c0_45] : memref<32x384xbf16, #tpu.memory_space<vmem>>, vector<32x384xbf16>
    %c1 = arith.constant 1 : index
    %c0_46 = arith.constant 0 : index
    %c0_47 = arith.constant 0 : index
    %83 = vector.load %arg10[%c1, %c0_46, %c0_47] : memref<2x384x128xbf16, #tpu.memory_space<vmem>>, vector<1x384x128xbf16>
    %84 = vector.shape_cast %83 : vector<1x384x128xbf16> to vector<384x128xbf16>
    %cst_48 = arith.constant dense<0.000000e+00> : vector<32x128xf32>
    %85 = tpu.matmul %82, %84, %cst_48 {dimension_numbers = #tpu.dot_dimension_numbers<[1], [0], [0], [1], [0, 0, 1, 1], [], []>} : vector<32x384xbf16>, vector<384x128xbf16>, vector<32x128xf32> -> vector<32x128xf32>
    %c1_49 = arith.constant 1 : index
    %c0_50 = arith.constant 0 : index
    %c0_51 = arith.constant 0 : index
    %86 = vector.load %arg4[%c1_49, %c0_50, %c0_51] : memref<2x1x128xf32, #tpu.memory_space<vmem>>, vector<1x1x128xf32>
    %87 = vector.shape_cast %86 : vector<1x1x128xf32> to vector<1x128xf32>
    %88 = vector.broadcast %87 : vector<1x128xf32> to vector<32x128xf32>
    %89 = arith.addf %85, %88 : vector<32x128xf32>
    %90 = arith.mulf %89, %89 : vector<32x128xf32>
    %91 = arith.mulf %89, %90 : vector<32x128xf32>
    %cst_52 = arith.constant 4.471500e-02 : f32
    %92 = vector.broadcast %cst_52 : f32 to vector<32x128xf32>
    %93 = arith.mulf %92, %91 : vector<32x128xf32>
    %94 = arith.addf %89, %93 : vector<32x128xf32>
    %cst_53 = arith.constant 0.797884583 : f32
    %95 = vector.broadcast %cst_53 : f32 to vector<32x128xf32>
    %96 = arith.mulf %95, %94 : vector<32x128xf32>
    %97 = math.tanh %96 : vector<32x128xf32>
    %cst_54 = arith.constant 1.000000e+00 : f32
    %98 = vector.broadcast %cst_54 : f32 to vector<32x128xf32>
    %99 = arith.addf %98, %97 : vector<32x128xf32>
    %cst_55 = arith.constant 5.000000e-01 : f32
    %100 = vector.broadcast %cst_55 : f32 to vector<32x128xf32>
    %101 = arith.mulf %100, %99 : vector<32x128xf32>
    %102 = arith.mulf %89, %101 : vector<32x128xf32>
    %103 = arith.truncf %102 : vector<32x128xf32> to vector<32x128xbf16>
    %104 = arith.extui %0 : i1 to i32
    %c0_i32_56 = arith.constant 0 : i32
    %105 = arith.cmpi ne, %104, %c0_i32_56 : i32
    scf.if %105 {
      %c2_i32 = arith.constant 2 : i32
      %112 = tpu.memref_slice %arg12[%c2_i32] : memref<3x!tpu.dma_semaphore, #tpu.memory_space<semaphore_mem>> -> memref<1x!tpu.dma_semaphore, #tpu.memory_space<semaphore_mem>>
      %113 = tpu.memref_squeeze %112 : memref<1x!tpu.dma_semaphore, #tpu.memory_space<semaphore_mem>> -> memref<!tpu.dma_semaphore, #tpu.memory_space<semaphore_mem>>
      tpu.wait_dma2 semaphore(%113 : memref<!tpu.dma_semaphore, #tpu.memory_space<semaphore_mem>>) src(%arg5 : memref<128x128xbf16, #tpu.memory_space<any>>) dst(%arg11 : memref<128x128xbf16, #tpu.memory_space<vmem>>)
    } else {
    }
    %c0_57 = arith.constant 0 : index
    %c0_58 = arith.constant 0 : index
    %106 = vector.load %arg11[%c0_57, %c0_58] : memref<128x128xbf16, #tpu.memory_space<vmem>>, vector<128x128xbf16>
    %cst_59 = arith.constant dense<0.000000e+00> : vector<32x128xf32>
    %107 = tpu.matmul %103, %106, %cst_59 {dimension_numbers = #tpu.dot_dimension_numbers<[1], [0], [0], [1], [0, 0, 1, 1], [], []>} : vector<32x128xbf16>, vector<128x128xbf16>, vector<32x128xf32> -> vector<32x128xf32>
    %c0_60 = arith.constant 0 : index
    %c0_61 = arith.constant 0 : index
    %108 = vector.load %arg6[%c0_60, %c0_61] : memref<1x128xf32, #tpu.memory_space<vmem>>, vector<1x128xf32>
    %109 = vector.broadcast %108 : vector<1x128xf32> to vector<32x128xf32>
    %110 = arith.addf %107, %109 : vector<32x128xf32>
    %c0_62 = arith.constant 0 : index
    %c0_63 = arith.constant 0 : index
    %111 = vector.load %arg7[%c0_62, %c0_63] : memref<32x128xf32, #tpu.memory_space<vmem>>, vector<32x128xf32>
    tpu.vector_store %arg7[%c0_62, %c0_63], %110 {strides = array<i32>} : memref<32x128xf32, #tpu.memory_space<vmem>>, vector<32x128xf32>,
    return
  }
  func.func @transform_0(%arg0: i32, %arg1: i32) -> (i32, i32) {
    %c1_i32 = arith.constant 1 : i32
    %0 = arith.muli %arg0, %c1_i32 : i32
    %1 = arith.addi %0, %arg1 : i32
    %c0_i32 = arith.constant 0 : i32
    %c0_i32_0 = arith.constant 0 : i32
    return %1, %c0_i32 : i32, i32
  }
  func.func @transform_2(%arg0: i32, %arg1: i32) -> (i32, i32, i32) {
    %c0_i32 = arith.constant 0 : i32
    %c0_i32_0 = arith.constant 0 : i32
    %c0_i32_1 = arith.constant 0 : i32
    %c0_i32_2 = arith.constant 0 : i32
    return %c0_i32, %c0_i32_0, %c0_i32_1 : i32, i32, i32
  }
  func.func @transform_4(%arg0: i32, %arg1: i32) -> (i32, i32) {
    %c0_i32 = arith.constant 0 : i32
    %c0_i32_0 = arith.constant 0 : i32
    %c0_i32_1 = arith.constant 0 : i32
    return %c0_i32, %c0_i32_0 : i32, i32
  }
  func.func @transform_5(%arg0: i32, %arg1: i32) -> (i32, i32) {
    %c1_i32 = arith.constant 1 : i32
    %0 = arith.muli %arg0, %c1_i32 : i32
    %1 = arith.addi %0, %arg1 : i32
    %c0_i32 = arith.constant 0 : i32
    %c0_i32_0 = arith.constant 0 : i32
    return %1, %c0_i32 : i32, i32
  }
}

</mosaic_0001>

<llo_original>
// kernel: tpu_custom_call.1
$region0: #{tpu_custom_call.1}
  #allocation0 [shape = 'u32[]', space=smem, size = 0x4, offset = 0x4, fixed_abs, tag = 'smem constant byte address 0x4 - core index']
  #allocation1 [shape = 'u32[144,128]{1,0:T(1,128)}', space=vmem, size = 0x12000, scoped, tag = 'internal scratch']
  #allocation2 [shape = 'bf16[32,384]{1,0:T(16,128)(2,1)}', space=vmem, size = 0x6000, scoped, tag = 'scratch operand']
  #allocation3 [shape = 'bf16[48,128]{1,0:T(16,128)(2,1)}', space=vmem, size = 0x3000, scoped, tag = 'scratch operand']
  #allocation4 [shape = 'bf16[2,384,128]{2,1,0:T(16,128)(2,1)}', space=vmem, size = 0x30000, scoped, tag = 'scratch operand']
  #allocation5 [shape = 'bf16[128,128]{1,0:T(16,128)(2,1)}', space=vmem, size = 0x8000, scoped, tag = 'scratch operand']
  #allocation6 [shape = 's32[3]{0}', space=sflag, size = 0xc, scoped, tag = 'scratch operand']
  #allocation11 [shape = 's32[]', space=sflag, size = 0x4, offset = 0, fixed_abs, tag = 'sflag constant byte address 0x0 - dummy sync flag']
  #allocation12 [shape = 's32[]', space=sflag, size = 0x4, offset = 0, fixed_abs, tag = 'sflag constant byte address 0x0 - dummy sync flag']
  #allocation13 [shape = 'u32[]', space=smem, size = 0x4, offset = 0x44, fixed_abs, tag = 'smem constant byte address 0x44 - assertion arg 0']
  #allocation14 [shape = 'u32[]', space=smem, size = 0x4, offset = 0x48, fixed_abs, tag = 'smem constant byte address 0x48 - assertion arg 1']
  #allocation15 [shape = 's32[]', space=sflag, size = 0x4, offset = 0, fixed_abs, tag = 'sflag constant byte address 0x0 - dummy sync flag']
  #allocation16 [shape = 's32[]', space=sflag, size = 0x4, offset = 0, fixed_abs, tag = 'sflag constant byte address 0x0 - dummy sync flag']
  #allocation17 [shape = 's32[]', space=sflag, size = 0x4, offset = 0, fixed_abs, tag = 'sflag constant byte address 0x0 - dummy sync flag']
  #allocation18 [shape = 's32[]', space=sflag, size = 0x4, offset = 0, fixed_abs, tag = 'sflag constant byte address 0x0 - dummy sync flag']
  %s0 = inlined_call_operand.hbm [shape: bf16[32,128], index: 0, kind: input, shape index: {}]
  %s1 = inlined_call_operand.hbm [shape: bf16[2,384,128], index: 1, kind: input, shape index: {}]
  %s2 = inlined_call_operand.vmem [shape: f32[2,1,128], index: 2, kind: input, shape index: {}]
  %s3 = inlined_call_operand.hbm [shape: bf16[128,128], index: 3, kind: input, shape index: {}]
  %s4 = inlined_call_operand.vmem [shape: f32[1,128], index: 4, kind: input, shape index: {}]
  %s5 = inlined_call_operand.hbm [shape: f32[32,128], index: 5, kind: output, shape index: {}]
  %s6 = sld [smem:[#allocation0]]
  $region54: #{tpu_custom_call.1} parent=0
    _
  %s8 = ssub.s32 1, %s6
  %s9 = scalar_select 0, %s8, %s6
  $region1: #{tpu_custom_call.1} parent=0
    #allocation7 [shape = 'u8[8192]{0}', space=vmem, size = 0x2000, scoped, tag = 'input window, operand 0, single buffered']
    #allocation8 [shape = 's32[1]{0}', space=sflag, size = 0x4, scoped, tag = 'scoped memory for tpu_custom_call.1']
    #allocation9 [shape = 's32[1]{0}', space=sflag, size = 0x4, scoped, tag = 'scoped memory for tpu_custom_call.1']
    #allocation10 [shape = 'u8[16384]{0}', space=vmem, size = 0x4000, scoped, tag = 'output window, operand 0, single buffered']
    %10 = vsyncpa [#allocation8], 0
    %11 = vsyncpa [#allocation9], 0
    // Predicated region
    $region2: #{tpu_custom_call.1} parent=1 // pred_check
      _
    $region3: #{tpu_custom_call.1} parent=1 // pred_check_branch
      %13 = sbr.rel (0) target = $region5
    $region4: #{tpu_custom_call.1} parent=1 // pred_region
      %s14 = sadd.s32 0, 0
      %s15 = smul.u32 4, %s14
      %s17 = ssub.s32 256, 256
      %18 = vsyncadd [#allocation8], %s17
      %s19 = smul.addr %s15, 64
      %s20 = scalar_lea.hbm %s0, %s19
      %s21 = sshll.u32 [#allocation7], 4
      %s22 = int_to_ptr.vmem [resolvable:$true] %s21
      %27 = dma.hbm_to_vmem [thread:$0]  %s20, 256, %s22, [#allocation8], 64, 64, 4
    $region5: #{tpu_custom_call.1} parent=1 // pred_fallthru
      _
    // Predicated region
    $region6: #{tpu_custom_call.1} parent=1 // pred_check
      _
    $region7: #{tpu_custom_call.1} parent=1 // pred_check_branch
      %29 = sbr.rel (0) target = $region9
    $region8: #{tpu_custom_call.1} parent=1 // pred_region
      _
    $region9: #{tpu_custom_call.1} parent=1 // pred_fallthru
      _
    // Predicated region
    $region10: #{tpu_custom_call.1} parent=1 // pred_check
      _
    $region11: #{tpu_custom_call.1} parent=1 // pred_check_branch
      %31 = sbr.rel (0) target = $region13
    $region12: #{tpu_custom_call.1} parent=1 // pred_region
      _
    $region13: #{tpu_custom_call.1} parent=1 // pred_fallthru
      _
    // Predicated region
    $region14: #{tpu_custom_call.1} parent=1 // pred_check
      _
    $region15: #{tpu_custom_call.1} parent=1 // pred_check_branch
      %33 = sbr.rel (0) target = $region17
    $region16: #{tpu_custom_call.1} parent=1 // pred_region
      %34 = dma.done [#allocation8], 256
    $region17: #{tpu_custom_call.1} parent=1 // pred_fallthru
      _
    %s35 = sadd.s32 0, 0
    %s36 = smul.u32 4, %s35
    %s37 = sadd.s32 0, 0
    %s38 = smul.u32 4, %s37
    %p40 = scmp.eq.s32.totalorder 0, 0
    // Predicated region
    $region18: #{tpu_custom_call.1} parent=1 // pred_check
      %p41 = pneg %p40
    $region19: #{tpu_custom_call.1} parent=1 // pred_check_branch
      %43 = sbr.rel (%p41) target = $region21
    $region20: #{tpu_custom_call.1} parent=1 // pred_region
      // Predicated region
      $region22: #{tpu_custom_call.1} parent=20 // pred_check
        _
      $region23: #{tpu_custom_call.1} parent=20 // pred_check_branch
        %45 = sbr.rel target = $region25
      $region24: #{tpu_custom_call.1} parent=20 // pred_region
        %46 = sst [smem:[#allocation13]] [#allocation12]
        %47 = sst [smem:[#allocation14]] [#allocation11]
      $region25: #{tpu_custom_call.1} parent=20 // pred_fallthru
        _
      %49 = shalt.err (0)
      %s51 = sshll.u32 [#allocation4], 4
      %s52 = int_to_ptr.vmem [resolvable:$true] %s51
      %54 = dma.hbm_to_vmem [thread:$0]  %s1, 3072, %s52, [#allocation6]
      %s55 = scalar_lea.hbm %s1, 3072
      %s56 = scalar_lea.vmem [#allocation4], 192
      %s57 = scalar_lea.sflag [#allocation6], 1
      // Predicated region
      $region26: #{tpu_custom_call.1} parent=20 // pred_check
        _
      $region27: #{tpu_custom_call.1} parent=20 // pred_check_branch
        %59 = sbr.rel target = $region29
      $region28: #{tpu_custom_call.1} parent=20 // pred_region
        %60 = sst [smem:[#allocation13]] [#allocation16]
        %61 = sst [smem:[#allocation14]] [#allocation15]
      $region29: #{tpu_custom_call.1} parent=20 // pred_fallthru
        _
      %63 = shalt.err (0)
      %s65 = sshll.u32 %s56, 4
      %s66 = int_to_ptr.vmem [resolvable:$true] %s65
      %68 = dma.hbm_to_vmem [thread:$0]  %s55, 3072, %s66, %s57
      %s69 = scalar_lea.sflag [#allocation6], 2
      // Predicated region
      $region30: #{tpu_custom_call.1} parent=20 // pred_check
        _
      $region31: #{tpu_custom_call.1} parent=20 // pred_check_branch
        %71 = sbr.rel target = $region33
      $region32: #{tpu_custom_call.1} parent=20 // pred_region
        %72 = sst [smem:[#allocation13]] [#allocation18]
        %73 = sst [smem:[#allocation14]] [#allocation17]
      $region33: #{tpu_custom_call.1} parent=20 // pred_fallthru
        _
      %75 = shalt.err (0)
      %s77 = sshll.u32 [#allocation5], 4
      %s78 = int_to_ptr.vmem [resolvable:$true] %s77
      %80 = dma.hbm_to_vmem [thread:$0]  %s3, 1024, %s78, %s69
    $region21: #{tpu_custom_call.1} parent=1 // pred_fallthru
      _
    %v81 = vlaneseq
    %v82 = vshrl.u32 %v81, 7
    %v83 = vadd.s32 %v82, 8
    %v84 = vadd.s32 %v82, 16
    %v85 = vadd.s32 %v82, 24
    %vm86 = vcmp.lt.s32.totalorder %v82, 0
    %v87 = vsub.s32 0, %v82
    %v88 = vsel %vm86, %v87, %v82
    %v89 = vshrl.u32 %v88, 4
    %v90 = vand.u32 %v88, 15
    %v91 = vsub.s32 0, %v90
    %v92 = vsel %vm86, %v91, %v90
    %vm93 = vcmp.lt.s32.totalorder %v83, 0
    %v94 = vsub.s32 0, %v83
    %v95 = vsel %vm93, %v94, %v83
    %v96 = vshrl.u32 %v95, 4
    %v97 = vand.u32 %v95, 15
    %v98 = vsub.s32 0, %v97
    %v99 = vsel %vm93, %v98, %v97
    %vm100 = vcmp.lt.s32.totalorder %v84, 0
    %v101 = vsub.s32 0, %v84
    %v102 = vsel %vm100, %v101, %v84
    %v103 = vshrl.u32 %v102, 4
    %v104 = vand.u32 %v102, 15
    %v105 = vsub.s32 0, %v104
    %v106 = vsel %vm100, %v105, %v104
    %vm107 = vcmp.lt.s32.totalorder %v85, 0
    %v108 = vsub.s32 0, %v85
    %v109 = vsel %vm107, %v108, %v85
    %v110 = vshrl.u32 %v109, 4
    %v111 = vand.u32 %v109, 15
    %v112 = vsub.s32 0, %v111
    %v113 = vsel %vm107, %v112, %v111
    %vm114 = vcmp.ne.s32.totalorder %v92, 0
    %vm115 = vcmp.ne.s32.totalorder %v99, 0
    %vm116 = vcmp.ne.s32.totalorder %v106, 0
    %vm117 = vcmp.ne.s32.totalorder %v113, 0
    %vm118 = vcmp.lt.s32.totalorder %v92, 0
    %vm119 = vcmp.lt.s32.totalorder %v99, 0
    %vm120 = vcmp.lt.s32.totalorder %v106, 0
    %vm121 = vcmp.lt.s32.totalorder %v113, 0
    %vm122 = vmand %vm118, %vm114
    %vm123 = vmand %vm119, %vm115
    %vm124 = vmand %vm120, %vm116
    %vm125 = vmand %vm121, %vm117
    %v126 = vadd.s32 %v92, 16
    %v127 = vadd.s32 %v99, 16
    %v128 = vadd.s32 %v106, 16
    %v129 = vadd.s32 %v113, 16
    %v130 = vsel %vm122, %v126, %v92
    %v131 = vsel %vm123, %v127, %v99
    %v132 = vsel %vm124, %v128, %v106
    %v133 = vsel %vm125, %v129, %v113
    %vm134 = vcmp.ge.s32.totalorder %v130, 1
    %vm135 = vcmp.ge.s32.totalorder %v131, 1
    %vm136 = vcmp.ge.s32.totalorder %v132, 1
    %vm137 = vcmp.ge.s32.totalorder %v133, 1
    %vm138 = vcmp.lt.s32.totalorder %v130, 17
    %vm139 = vcmp.lt.s32.totalorder %v131, 17
    %vm140 = vcmp.lt.s32.totalorder %v132, 17
    %vm141 = vcmp.lt.s32.totalorder %v133, 17
    %vm142 = vmand %vm134, %vm138
    %vm143 = vmand %vm135, %vm139
    %vm144 = vmand %vm136, %vm140
    %vm145 = vmand %vm137, %vm141
    %v146 = vsel %vm142, 1, 0
    %v147 = vsel %vm143, 1, 0
    %v148 = vsel %vm144, 1, 0
    %v149 = vsel %vm145, 1, 0
    %v150 = vcvt.s32.f32 %v146
    %v151 = vcvt.s32.f32 %v147
    %v152 = vcvt.s32.f32 %v148
    %v153 = vcvt.s32.f32 %v149
    %v154 = vpack.c.bf16 %v151, %v150
    %v155 = vpack.c.bf16 %v153, %v152
    %vm156 = vcmp.ge.s32.totalorder %v130, 4294967295
    %vm157 = vcmp.ge.s32.totalorder %v131, 4294967295
    %vm158 = vcmp.ge.s32.totalorder %v132, 4294967295
    %vm159 = vcmp.ge.s32.totalorder %v133, 4294967295
    %vm160 = vcmp.lt.s32.totalorder %v130, 15
    %vm161 = vcmp.lt.s32.totalorder %v131, 15
    %vm162 = vcmp.lt.s32.totalorder %v132, 15
    %vm163 = vcmp.lt.s32.totalorder %v133, 15
    %vm164 = vmand %vm156, %vm160
    %vm165 = vmand %vm157, %vm161
    %vm166 = vmand %vm158, %vm162
    %vm167 = vmand %vm159, %vm163
    %v168 = vsel %vm164, 1, 0
    %v169 = vsel %vm165, 1, 0
    %v170 = vsel %vm166, 1, 0
    %v171 = vsel %vm167, 1, 0
    %v172 = vcvt.s32.f32 %v168
    %v173 = vcvt.s32.f32 %v169
    %v174 = vcvt.s32.f32 %v170
    %v175 = vcvt.s32.f32 %v171
    %v176 = vpack.c.bf16 %v173, %v172
    %v177 = vpack.c.bf16 %v175, %v174
    %178 = vst [vmem:[#allocation3] sm:$0xf] 0
    %179 = vst [vmem:[#allocation3 + $0x10] sm:$0xf0] 0
    %v180 = vld [vmem:[#allocation7] sm:$0xf]
    %v181 = vld [vmem:[#allocation7 + $0x4] sm:$0xf]
    %v182 = vld [vmem:[#allocation7 + $0x8] sm:$0xf]
    %v183 = vld [vmem:[#allocation7 + $0xc] sm:$0xf]
    %v188 = vunpack.c.l.b16 %v180
    %v189 = vunpack.c.l.b16 %v181
    %v190 = vunpack.c.l.b16 %v182
    %v191 = vunpack.c.l.b16 %v183
    %v192 = vpack.c.b16 %v188, %v188
    %v193 = vpack.c.b16 %v190, %v189
    %v194 = vpack.c.b16 %v191, %v191
    %198 = vst [vmem:[#allocation3] sm:$0xf0] %v192
    %199 = vst [vmem:[#allocation3 + $0x8] sm:$0xff] %v193
    %200 = vst [vmem:[#allocation3 + $0x10] sm:$0xf] %v194
    %v201 = vld [vmem:[#allocation3] sm:$0xf8]
    %v202 = vld [vmem:[#allocation3 + $0x8] sm:$0xff]
    %v203 = vld [vmem:[#allocation3 + $0x10] sm:$0xf]
    %vm204 = vsmask.f32 3328
    %v206 = vshrl.u32 %v154, 16
    %v208 = vrot.slane %v206, 4
    %v209 = vshll.u32 %v154, 16
    %v211 = vrot.slane %v209, 5
    %v212 = vor.u32 %v208, %v211
    %v214 = vshrl.u32 %v155, 16
    %v216 = vrot.slane %v214, 4
    %v217 = vshll.u32 %v155, 16
    %v219 = vrot.slane %v217, 5
    %v220 = vor.u32 %v216, %v219
    %v221 = vsel %vm204, %v212, %v220
    %v225 = vmul.bf16 %v201, %v212
    %v226 = vmul.bf16 %v202, %v221
    %v227 = vmul.bf16 %v203, %v220
    %vm228 = vsmask.f32 4352
    %v230 = vshrl.u32 %v225, 16
    %v232 = vrot.slane %v230, 3
    %v233 = vshll.u32 %v225, 16
    %v235 = vrot.slane %v233, 4
    %v236 = vor.u32 %v232, %v235
    %v238 = vshrl.u32 %v226, 16
    %v240 = vrot.slane %v238, 3
    %v241 = vshll.u32 %v226, 16
    %v243 = vrot.slane %v241, 4
    %v244 = vor.u32 %v240, %v243
    %v245 = vsel %vm228, %v236, %v244
    %v247 = vshrl.u32 %v227, 16
    %v249 = vrot.slane %v247, 3
    %v250 = vshll.u32 %v227, 16
    %v252 = vrot.slane %v250, 4
    %v253 = vor.u32 %v249, %v252
    %v254 = vsel %vm228, %v244, %v253
    %257 = vst [vmem:[#allocation2] sm:$0xff] %v245
    %258 = vst [vmem:[#allocation2 + $0x18] sm:$0xff] %v254
    %v259 = vpack.c.b16 %v189, %v188
    %v260 = vpack.c.b16 %v191, %v190
    %263 = vst [vmem:[#allocation2 + $0x8] sm:$0xff] %v259
    %264 = vst [vmem:[#allocation2 + $0x20] sm:$0xff] %v260
    %v265 = vld [vmem:[#allocation3] sm:$0xf0]
    %v266 = vld [vmem:[#allocation3 + $0x8] sm:$0xff]
    %v267 = vld [vmem:[#allocation3 + $0x10] sm:$0x1f]
    %v269 = vshrl.u32 %v176, 16
    %v271 = vrot.slane %v269, 3
    %v272 = vshll.u32 %v176, 16
    %v274 = vrot.slane %v272, 4
    %v275 = vor.u32 %v271, %v274
    %v277 = vshrl.u32 %v177, 16
    %v279 = vrot.slane %v277, 3
    %v280 = vshll.u32 %v177, 16
    %v282 = vrot.slane %v280, 4
    %v283 = vor.u32 %v279, %v282
    %v284 = vsel %vm228, %v275, %v283
    %v288 = vmul.bf16 %v265, %v275
    %v289 = vmul.bf16 %v266, %v284
    %v290 = vmul.bf16 %v267, %v283
    %v292 = vshrl.u32 %v288, 16
    %v294 = vrot.slane %v292, 4
    %v295 = vshll.u32 %v288, 16
    %v297 = vrot.slane %v295, 5
    %v298 = vor.u32 %v294, %v297
    %v300 = vshrl.u32 %v289, 16
    %v302 = vrot.slane %v300, 4
    %v303 = vshll.u32 %v289, 16
    %v305 = vrot.slane %v303, 5
    %v306 = vor.u32 %v302, %v305
    %v307 = vsel %vm204, %v298, %v306
    %v309 = vshrl.u32 %v290, 16
    %v311 = vrot.slane %v309, 4
    %v312 = vshll.u32 %v290, 16
    %v314 = vrot.slane %v312, 5
    %v315 = vor.u32 %v311, %v314
    %v316 = vsel %vm204, %v306, %v315
    %319 = vst [vmem:[#allocation2 + $0x10] sm:$0xff] %v307
    %320 = vst [vmem:[#allocation2 + $0x28] sm:$0xff] %v316
    // Predicated region
    $region34: #{tpu_custom_call.1} parent=1 // pred_check
      %p321 = pneg %p40
    $region35: #{tpu_custom_call.1} parent=1 // pred_check_branch
      %323 = sbr.rel (%p321) target = $region37
    $region36: #{tpu_custom_call.1} parent=1 // pred_region
      %s324 = smul.u32 4, 48
      %s325 = smul.u32 %s324, 1
      %s326 = sshll.u32 %s325, 4
      %327 = dma.done [#allocation6], %s326
    $region37: #{tpu_custom_call.1} parent=1 // pred_fallthru
      _
    %v328 = vld [vmem:[#allocation2] sm:$0xff]
    %v329 = vld [vmem:[#allocation2 + $0x8] sm:$0xff]
    %v330 = vld [vmem:[#allocation2 + $0x10] sm:$0xff]
    %v331 = vld [vmem:[#allocation2 + $0x18] sm:$0xff]
    %v332 = vld [vmem:[#allocation2 + $0x20] sm:$0xff]
    %v333 = vld [vmem:[#allocation2 + $0x28] sm:$0xff]
    %v334 = vld [vmem:[#allocation4] sm:$0xff]
    %v335 = vld [vmem:[#allocation4 + $0x8] sm:$0xff]
    %v336 = vld [vmem:[#allocation4 + $0x10] sm:$0xff]
    %v337 = vld [vmem:[#allocation4 + $0x18] sm:$0xff]
    %v338 = vld [vmem:[#allocation4 + $0x20] sm:$0xff]
    %v339 = vld [vmem:[#allocation4 + $0x28] sm:$0xff]
    %v340 = vld [vmem:[#allocation4 + $0x30] sm:$0xff]
    %v341 = vld [vmem:[#allocation4 + $0x38] sm:$0xff]
    %v342 = vld [vmem:[#allocation4 + $0x40] sm:$0xff]
    %v343 = vld [vmem:[#allocation4 + $0x48] sm:$0xff]
    %v344 = vld [vmem:[#allocation4 + $0x50] sm:$0xff]
    %v345 = vld [vmem:[#allocation4 + $0x58] sm:$0xff]
    %v346 = vld [vmem:[#allocation4 + $0x60] sm:$0xff]
    %v347 = vld [vmem:[#allocation4 + $0x68] sm:$0xff]
    %v348 = vld [vmem:[#allocation4 + $0x70] sm:$0xff]
    %v349 = vld [vmem:[#allocation4 + $0x78] sm:$0xff]
    %v350 = vld [vmem:[#allocation4 + $0x80] sm:$0xff]
    %v351 = vld [vmem:[#allocation4 + $0x88] sm:$0xff]
    %v352 = vld [vmem:[#allocation4 + $0x90] sm:$0xff]
    %v353 = vld [vmem:[#allocation4 + $0x98] sm:$0xff]
    %v354 = vld [vmem:[#allocation4 + $0xa0] sm:$0xff]
    %v355 = vld [vmem:[#allocation4 + $0xa8] sm:$0xff]
    %v356 = vld [vmem:[#allocation4 + $0xb0] sm:$0xff]
    %v357 = vld [vmem:[#allocation4 + $0xb8] sm:$0xff]
    %v358 = vld [vmem:[%s2] sm:$0x1]
    %v360 = vlaneseq
    %v361 = vshrl.u32 %v360, 7
    %v362 = vsub.s32 0, %v361
    %v363 = vrot.slane %v358, %v362
    %365 = vmatprep.subr.bf16.mxu0 0
    %366 = vmatpush1.bf16.msra.mxu0 %v334
    %367 = vmatprep.subr.bf16.mxu0 0
    %368 = vmatpush1.bf16.msra.mxu0 %v335
    %369 = vmatprep.subr.bf16.mxu0 0
    %370 = vmatpush1.bf16.msra.mxu0 %v336
    %371 = vmatprep.subr.bf16.mxu0 0
    %372 = vmatpush1.bf16.msra.mxu0 %v337
    %373 = vmatprep.subr.bf16.mxu0 0
    %374 = vmatpush1.bf16.msra.mxu0 %v338
    %375 = vmatprep.subr.bf16.mxu0 0
    %376 = vmatpush1.bf16.msra.mxu0 %v339
    %377 = vmatprep.subr.bf16.mxu0 0
    %378 = vmatpush1.bf16.msra.mxu0 %v340
    %379 = vmatprep.subr.bf16.mxu0 0
    %380 = vmatpush1.bf16.msra.mxu0 %v341
    %381 = vmatprep.subr.bf16.mxu0 0
    %382 = vmatpush1.bf16.msra.mxu0 %v342
    %383 = vmatprep.subr.bf16.mxu0 0
    %384 = vmatpush1.bf16.msra.mxu0 %v343
    %385 = vmatprep.subr.bf16.mxu0 0
    %386 = vmatpush1.bf16.msra.mxu0 %v344
    %387 = vmatprep.subr.bf16.mxu0 0
    %388 = vmatpush1.bf16.msra.mxu0 %v345
    %389 = vmatprep.subr.bf16.mxu0 0
    %390 = vmatpush1.bf16.msra.mxu0 %v346
    %391 = vmatprep.subr.bf16.mxu0 0
    %392 = vmatpush1.bf16.msra.mxu0 %v347
    %393 = vmatprep.subr.bf16.mxu0 0
    %394 = vmatpush1.bf16.msra.mxu0 %v348
    %395 = vmatprep.subr.bf16.mxu0 0
    %396 = vmatpush1.bf16.msra.mxu0 %v349
    %397 = vmatprep.mubr.bf16.mxu0 %v329
    %398 = vmatmul.mubr.bf16.gmra.mrb[0].mxu0 %v328
    %v399 = vpop.f32.mrb[0].mxu0
    %v400 = vadd.f32 %v363, %v399
    %v401 = vpop.f32.mrb[0].mxu0
    %v402 = vpop.f32.mrb[0].mxu0
    %v403 = vadd.f32 %v363, %v402
    %v404 = vpop.f32.mrb[0].mxu0
    %405 = vmatprep.mubr.bf16.mxu0 %v332
    %406 = vmatmul.mubr.bf16.gmra.mrb[0].mxu0 %v331
    %v407 = vpop.f32.mrb[0].mxu0
    %v408 = vadd.f32 %v363, %v407
    %v409 = vpop.f32.mrb[0].mxu0
    %v410 = vpop.f32.mrb[0].mxu0
    %v411 = vadd.f32 %v363, %v410
    %v412 = vpop.f32.mrb[0].mxu0
    %413 = vdwg.mxu0
    %414 = vmatprep.subr.bf16.mxu0 0
    %415 = vmatpush1.bf16.msra.mxu0 %v350
    %416 = vmatprep.subr.bf16.mxu0 0
    %417 = vmatpush1.bf16.msra.mxu0 %v351
    %418 = vmatprep.subr.bf16.mxu0 0
    %419 = vmatpush1.bf16.msra.mxu0 %v352
    %420 = vmatprep.subr.bf16.mxu0 0
    %421 = vmatpush1.bf16.msra.mxu0 %v353
    %422 = vmatprep.subr.bf16.mxu0 0
    %423 = vmatpush1.bf16.msra.mxu0 %v354
    %424 = vmatprep.subr.bf16.mxu0 0
    %425 = vmatpush1.bf16.msra.mxu0 %v355
    %426 = vmatprep.subr.bf16.mxu0 0
    %427 = vmatpush1.bf16.msra.mxu0 %v356
    %428 = vmatprep.subr.bf16.mxu0 0
    %429 = vmatpush1.bf16.msra.mxu0 %v357
    %430 = vmatprep.subr.bf16.mxu0 0
    %431 = vmatpush1.bf16.msra.mxu0 0
    %432 = vmatprep.subr.bf16.mxu0 0
    %433 = vmatpush1.bf16.msra.mxu0 0
    %434 = vmatprep.subr.bf16.mxu0 0
    %435 = vmatpush1.bf16.msra.mxu0 0
    %436 = vmatprep.subr.bf16.mxu0 0
    %437 = vmatpush1.bf16.msra.mxu0 0
    %438 = vmatprep.subr.bf16.mxu0 0
    %439 = vmatpush1.bf16.msra.mxu0 0
    %440 = vmatprep.subr.bf16.mxu0 0
    %441 = vmatpush1.bf16.msra.mxu0 0
    %442 = vmatprep.subr.bf16.mxu0 0
    %443 = vmatpush1.bf16.msra.mxu0 0
    %444 = vmatprep.subr.bf16.mxu0 0
    %445 = vmatpush1.bf16.msra.mxu0 0
    %446 = vmatprep.mubr.bf16.mxu0 0
    %447 = vmatmul.mubr.bf16.gmra.mrb[0].mxu0 %v330
    %v448 = vpop.f32.mrb[0].mxu0
    %v449 = vadd.f32 %v400, %v448
    %v450 = vpop.f32.mrb[0].mxu0
    %v451 = vpop.f32.mrb[0].mxu0
    %v452 = vadd.f32 %v403, %v451
    %v453 = vpop.f32.mrb[0].mxu0
    %454 = vmatprep.mubr.bf16.mxu0 0
    %455 = vmatmul.mubr.bf16.gmra.mrb[0].mxu0 %v333
    %v456 = vpop.f32.mrb[0].mxu0
    %v457 = vadd.f32 %v408, %v456
    %v458 = vpop.f32.mrb[0].mxu0
    %v459 = vpop.f32.mrb[0].mxu0
    %v460 = vadd.f32 %v411, %v459
    %v461 = vpop.f32.mrb[0].mxu0
    %462 = vdwg.mxu0
    %v463 = vmul.f32 %v449, %v449
    %v464 = vmul.f32 %v452, %v452
    %v465 = vmul.f32 %v457, %v457
    %v466 = vmul.f32 %v460, %v460
    %v467 = vmul.f32 %v449, %v463
    %v468 = vmul.f32 %v452, %v464
    %v469 = vmul.f32 %v457, %v465
    %v470 = vmul.f32 %v460, %v466
    %v471 = vmul.f32 %v467, 0.044715
    %v472 = vmul.f32 %v468, 0.044715
    %v473 = vmul.f32 %v469, 0.044715
    %v474 = vmul.f32 %v470, 0.044715
    %v475 = vadd.f32 %v449, %v471
    %v476 = vadd.f32 %v452, %v472
    %v477 = vadd.f32 %v457, %v473
    %v478 = vadd.f32 %v460, %v474
    %v479 = vmul.f32 %v475, 0.7978846
    %v480 = vmul.f32 %v476, 0.7978846
    %v481 = vmul.f32 %v477, 0.7978846
    %v482 = vmul.f32 %v478, 0.7978846
    %v483 = vtanh.pop %v479
    %v484 = vtanh.pop %v480
    %v485 = vtanh.pop %v481
    %v486 = vtanh.pop %v482
    %v487 = vadd.f32 %v483, 1.0
    %v488 = vadd.f32 %v484, 1.0
    %v489 = vadd.f32 %v485, 1.0
    %v490 = vadd.f32 %v486, 1.0
    %v491 = vmul.f32 %v487, 0.5
    %v492 = vmul.f32 %v488, 0.5
    %v493 = vmul.f32 %v489, 0.5
    %v494 = vmul.f32 %v490, 0.5
    %v495 = vmul.f32 %v449, %v491
    %v496 = vmul.f32 %v452, %v492
    %v497 = vmul.f32 %v457, %v493
    %v498 = vmul.f32 %v460, %v494
    %v499 = vpack.c.bf16 %v496, %v495
    %v500 = vpack.c.bf16 %v498, %v497
    %vm503 = vcmask 1043456
    %v504 = vrot.slane %v499, 4
    %v505 = vrot.slane %v500, 4
    %v506 = vsel %vm503, %v504, %v505
    %510 = vst [vmem:[#allocation3] sm:$0xf0] %v504
    %511 = vst [vmem:[#allocation3 + $0x8] sm:$0xff] %v506
    %512 = vst [vmem:[#allocation3 + $0x10] sm:$0xf] %v505
    %v513 = vld [vmem:[#allocation3] sm:$0xf8]
    %v514 = vld [vmem:[#allocation3 + $0x8] sm:$0xff]
    %v515 = vld [vmem:[#allocation3 + $0x10] sm:$0xf]
    %v516 = vmul.bf16 %v513, %v212
    %v517 = vmul.bf16 %v514, %v221
    %v518 = vmul.bf16 %v515, %v220
    %v520 = vshrl.u32 %v516, 16
    %v522 = vrot.slane %v520, 3
    %v523 = vshll.u32 %v516, 16
    %v525 = vrot.slane %v523, 4
    %v526 = vor.u32 %v522, %v525
    %v528 = vshrl.u32 %v517, 16
    %v530 = vrot.slane %v528, 3
    %v531 = vshll.u32 %v517, 16
    %v533 = vrot.slane %v531, 4
    %v534 = vor.u32 %v530, %v533
    %v535 = vsel %vm228, %v526, %v534
    %v537 = vshrl.u32 %v518, 16
    %v539 = vrot.slane %v537, 3
    %v540 = vshll.u32 %v518, 16
    %v542 = vrot.slane %v540, 4
    %v543 = vor.u32 %v539, %v542
    %v544 = vsel %vm228, %v534, %v543
    %547 = vst [vmem:[#allocation2] sm:$0xff] %v535
    %548 = vst [vmem:[#allocation2 + $0x18] sm:$0xff] %v544
    %549 = vst [vmem:[#allocation2 + $0x8] sm:$0xff] %v499
    %550 = vst [vmem:[#allocation2 + $0x20] sm:$0xff] %v500
    %v551 = vld [vmem:[#allocation3] sm:$0xf0]
    %v552 = vld [vmem:[#allocation3 + $0x8] sm:$0xff]
    %v553 = vld [vmem:[#allocation3 + $0x10] sm:$0x1f]
    %v554 = vmul.bf16 %v551, %v275
    %v555 = vmul.bf16 %v552, %v284
    %v556 = vmul.bf16 %v553, %v283
    %v558 = vshrl.u32 %v554, 16
    %v560 = vrot.slane %v558, 4
    %v561 = vshll.u32 %v554, 16
    %v563 = vrot.slane %v561, 5
    %v564 = vor.u32 %v560, %v563
    %v566 = vshrl.u32 %v555, 16
    %v568 = vrot.slane %v566, 4
    %v569 = vshll.u32 %v555, 16
    %v571 = vrot.slane %v569, 5
    %v572 = vor.u32 %v568, %v571
    %v573 = vsel %vm204, %v564, %v572
    %v575 = vshrl.u32 %v556, 16
    %v577 = vrot.slane %v575, 4
    %v578 = vshll.u32 %v556, 16
    %v580 = vrot.slane %v578, 5
    %v581 = vor.u32 %v577, %v580
    %v582 = vsel %vm204, %v572, %v581
    %585 = vst [vmem:[#allocation2 + $0x10] sm:$0xff] %v573
    %586 = vst [vmem:[#allocation2 + $0x28] sm:$0xff] %v582
    // Predicated region
    $region38: #{tpu_custom_call.1} parent=1 // pred_check
      %p587 = pneg %p40
    $region39: #{tpu_custom_call.1} parent=1 // pred_check_branch
      %589 = sbr.rel (%p587) target = $region41
    $region40: #{tpu_custom_call.1} parent=1 // pred_region
      %s590 = scalar_lea.sflag [#allocation6], 1
      %s591 = smul.u32 4, 48
      %s592 = smul.u32 %s591, 1
      %s593 = sshll.u32 %s592, 4
      %594 = dma.done %s590, %s593
    $region41: #{tpu_custom_call.1} parent=1 // pred_fallthru
      _
    %v595 = vld [vmem:[#allocation2] sm:$0xff]
    %v596 = vld [vmem:[#allocation2 + $0x8] sm:$0xff]
    %v597 = vld [vmem:[#allocation2 + $0x10] sm:$0xff]
    %v598 = vld [vmem:[#allocation2 + $0x18] sm:$0xff]
    %v599 = vld [vmem:[#allocation2 + $0x20] sm:$0xff]
    %v600 = vld [vmem:[#allocation2 + $0x28] sm:$0xff]
    %s601 = scalar_lea.vmem [#allocation4], 192
    %v602 = vld [vmem:[%s601] sm:$0xff]
    %v603 = vld [vmem:[%s601 + $0x8] sm:$0xff]
    %v604 = vld [vmem:[%s601 + $0x10] sm:$0xff]
    %v605 = vld [vmem:[%s601 + $0x18] sm:$0xff]
    %v606 = vld [vmem:[%s601 + $0x20] sm:$0xff]
    %v607 = vld [vmem:[%s601 + $0x28] sm:$0xff]
    %v608 = vld [vmem:[%s601 + $0x30] sm:$0xff]
    %v609 = vld [vmem:[%s601 + $0x38] sm:$0xff]
    %v610 = vld [vmem:[%s601 + $0x40] sm:$0xff]
    %v611 = vld [vmem:[%s601 + $0x48] sm:$0xff]
    %v612 = vld [vmem:[%s601 + $0x50] sm:$0xff]
    %v613 = vld [vmem:[%s601 + $0x58] sm:$0xff]
    %v614 = vld [vmem:[%s601 + $0x60] sm:$0xff]
    %v615 = vld [vmem:[%s601 + $0x68] sm:$0xff]
    %v616 = vld [vmem:[%s601 + $0x70] sm:$0xff]
    %v617 = vld [vmem:[%s601 + $0x78] sm:$0xff]
    %v618 = vld [vmem:[%s601 + $0x80] sm:$0xff]
    %v619 = vld [vmem:[%s601 + $0x88] sm:$0xff]
    %v620 = vld [vmem:[%s601 + $0x90] sm:$0xff]
    %v621 = vld [vmem:[%s601 + $0x98] sm:$0xff]
    %v622 = vld [vmem:[%s601 + $0xa0] sm:$0xff]
    %v623 = vld [vmem:[%s601 + $0xa8] sm:$0xff]
    %v624 = vld [vmem:[%s601 + $0xb0] sm:$0xff]
    %v625 = vld [vmem:[%s601 + $0xb8] sm:$0xff]
    %s626 = scalar_lea.vmem %s2, 1
    %v627 = vld [vmem:[%s626] sm:$0x1]
    %v629 = vlaneseq
    %v630 = vshrl.u32 %v629, 7
    %v631 = vsub.s32 0, %v630
    %v632 = vrot.slane %v627, %v631
    %634 = vmatprep.subr.bf16.mxu0 0
    %635 = vmatpush1.bf16.msra.mxu0 %v602
    %636 = vmatprep.subr.bf16.mxu0 0
    %637 = vmatpush1.bf16.msra.mxu0 %v603
    %638 = vmatprep.subr.bf16.mxu0 0
    %639 = vmatpush1.bf16.msra.mxu0 %v604
    %640 = vmatprep.subr.bf16.mxu0 0
    %641 = vmatpush1.bf16.msra.mxu0 %v605
    %642 = vmatprep.subr.bf16.mxu0 0
    %643 = vmatpush1.bf16.msra.mxu0 %v606
    %644 = vmatprep.subr.bf16.mxu0 0
    %645 = vmatpush1.bf16.msra.mxu0 %v607
    %646 = vmatprep.subr.bf16.mxu0 0
    %647 = vmatpush1.bf16.msra.mxu0 %v608
    %648 = vmatprep.subr.bf16.mxu0 0
    %649 = vmatpush1.bf16.msra.mxu0 %v609
    %650 = vmatprep.subr.bf16.mxu0 0
    %651 = vmatpush1.bf16.msra.mxu0 %v610
    %652 = vmatprep.subr.bf16.mxu0 0
    %653 = vmatpush1.bf16.msra.mxu0 %v611
    %654 = vmatprep.subr.bf16.mxu0 0
    %655 = vmatpush1.bf16.msra.mxu0 %v612
    %656 = vmatprep.subr.bf16.mxu0 0
    %657 = vmatpush1.bf16.msra.mxu0 %v613
    %658 = vmatprep.subr.bf16.mxu0 0
    %659 = vmatpush1.bf16.msra.mxu0 %v614
    %660 = vmatprep.subr.bf16.mxu0 0
    %661 = vmatpush1.bf16.msra.mxu0 %v615
    %662 = vmatprep.subr.bf16.mxu0 0
    %663 = vmatpush1.bf16.msra.mxu0 %v616
    %664 = vmatprep.subr.bf16.mxu0 0
    %665 = vmatpush1.bf16.msra.mxu0 %v617
    %666 = vmatprep.mubr.bf16.mxu0 %v596
    %667 = vmatmul.mubr.bf16.gmra.mrb[0].mxu0 %v595
    %v668 = vpop.f32.mrb[0].mxu0
    %v669 = vadd.f32 %v632, %v668
    %v670 = vpop.f32.mrb[0].mxu0
    %v671 = vpop.f32.mrb[0].mxu0
    %v672 = vadd.f32 %v632, %v671
    %v673 = vpop.f32.mrb[0].mxu0
    %674 = vmatprep.mubr.bf16.mxu0 %v599
    %675 = vmatmul.mubr.bf16.gmra.mrb[0].mxu0 %v598
    %v676 = vpop.f32.mrb[0].mxu0
    %v677 = vadd.f32 %v632, %v676
    %v678 = vpop.f32.mrb[0].mxu0
    %v679 = vpop.f32.mrb[0].mxu0
    %v680 = vadd.f32 %v632, %v679
    %v681 = vpop.f32.mrb[0].mxu0
    %682 = vdwg.mxu0
    %683 = vmatprep.subr.bf16.mxu0 0
    %684 = vmatpush1.bf16.msra.mxu0 %v618
    %685 = vmatprep.subr.bf16.mxu0 0
    %686 = vmatpush1.bf16.msra.mxu0 %v619
    %687 = vmatprep.subr.bf16.mxu0 0
    %688 = vmatpush1.bf16.msra.mxu0 %v620
    %689 = vmatprep.subr.bf16.mxu0 0
    %690 = vmatpush1.bf16.msra.mxu0 %v621
    %691 = vmatprep.subr.bf16.mxu0 0
    %692 = vmatpush1.bf16.msra.mxu0 %v622
    %693 = vmatprep.subr.bf16.mxu0 0
    %694 = vmatpush1.bf16.msra.mxu0 %v623
    %695 = vmatprep.subr.bf16.mxu0 0
    %696 = vmatpush1.bf16.msra.mxu0 %v624
    %697 = vmatprep.subr.bf16.mxu0 0
    %698 = vmatpush1.bf16.msra.mxu0 %v625
    %699 = vmatprep.subr.bf16.mxu0 0
    %700 = vmatpush1.bf16.msra.mxu0 0
    %701 = vmatprep.subr.bf16.mxu0 0
    %702 = vmatpush1.bf16.msra.mxu0 0
    %703 = vmatprep.subr.bf16.mxu0 0
    %704 = vmatpush1.bf16.msra.mxu0 0
    %705 = vmatprep.subr.bf16.mxu0 0
    %706 = vmatpush1.bf16.msra.mxu0 0
    %707 = vmatprep.subr.bf16.mxu0 0
    %708 = vmatpush1.bf16.msra.mxu0 0
    %709 = vmatprep.subr.bf16.mxu0 0
    %710 = vmatpush1.bf16.msra.mxu0 0
    %711 = vmatprep.subr.bf16.mxu0 0
    %712 = vmatpush1.bf16.msra.mxu0 0
    %713 = vmatprep.subr.bf16.mxu0 0
    %714 = vmatpush1.bf16.msra.mxu0 0
    %715 = vmatprep.mubr.bf16.mxu0 0
    %716 = vmatmul.mubr.bf16.gmra.mrb[0].mxu0 %v597
    %v717 = vpop.f32.mrb[0].mxu0
    %v718 = vadd.f32 %v669, %v717
    %v719 = vpop.f32.mrb[0].mxu0
    %v720 = vpop.f32.mrb[0].mxu0
    %v721 = vadd.f32 %v672, %v720
    %v722 = vpop.f32.mrb[0].mxu0
    %723 = vmatprep.mubr.bf16.mxu0 0
    %724 = vmatmul.mubr.bf16.gmra.mrb[0].mxu0 %v600
    %v725 = vpop.f32.mrb[0].mxu0
    %v726 = vadd.f32 %v677, %v725
    %v727 = vpop.f32.mrb[0].mxu0
    %v728 = vpop.f32.mrb[0].mxu0
    %v729 = vadd.f32 %v680, %v728
    %v730 = vpop.f32.mrb[0].mxu0
    %731 = vdwg.mxu0
    %v732 = vmul.f32 %v718, %v718
    %v733 = vmul.f32 %v721, %v721
    %v734 = vmul.f32 %v726, %v726
    %v735 = vmul.f32 %v729, %v729
    %v736 = vmul.f32 %v718, %v732
    %v737 = vmul.f32 %v721, %v733
    %v738 = vmul.f32 %v726, %v734
    %v739 = vmul.f32 %v729, %v735
    %v740 = vmul.f32 %v736, 0.044715
    %v741 = vmul.f32 %v737, 0.044715
    %v742 = vmul.f32 %v738, 0.044715
    %v743 = vmul.f32 %v739, 0.044715
    %v744 = vadd.f32 %v718, %v740
    %v745 = vadd.f32 %v721, %v741
    %v746 = vadd.f32 %v726, %v742
    %v747 = vadd.f32 %v729, %v743
    %v748 = vmul.f32 %v744, 0.7978846
    %v749 = vmul.f32 %v745, 0.7978846
    %v750 = vmul.f32 %v746, 0.7978846
    %v751 = vmul.f32 %v747, 0.7978846
    %v752 = vtanh.pop %v748
    %v753 = vtanh.pop %v749
    %v754 = vtanh.pop %v750
    %v755 = vtanh.pop %v751
    %v756 = vadd.f32 %v752, 1.0
    %v757 = vadd.f32 %v753, 1.0
    %v758 = vadd.f32 %v754, 1.0
    %v759 = vadd.f32 %v755, 1.0
    %v760 = vmul.f32 %v756, 0.5
    %v761 = vmul.f32 %v757, 0.5
    %v762 = vmul.f32 %v758, 0.5
    %v763 = vmul.f32 %v759, 0.5
    %v764 = vmul.f32 %v718, %v760
    %v765 = vmul.f32 %v721, %v761
    %v766 = vmul.f32 %v726, %v762
    %v767 = vmul.f32 %v729, %v763
    %v768 = vpack.c.bf16 %v765, %v764
    %v769 = vpack.c.bf16 %v767, %v766
    // Predicated region
    $region42: #{tpu_custom_call.1} parent=1 // pred_check
      %p770 = pneg %p40
    $region43: #{tpu_custom_call.1} parent=1 // pred_check_branch
      %772 = sbr.rel (%p770) target = $region45
    $region44: #{tpu_custom_call.1} parent=1 // pred_region
      %s773 = scalar_lea.sflag [#allocation6], 2
      %s774 = smul.u32 4, 16
      %s775 = smul.u32 %s774, 1
      %s776 = sshll.u32 %s775, 4
      %777 = dma.done %s773, %s776
    $region45: #{tpu_custom_call.1} parent=1 // pred_fallthru
      _
    %v778 = vld [vmem:[#allocation5] sm:$0xff]
    %v779 = vld [vmem:[#allocation5 + $0x8] sm:$0xff]
    %v780 = vld [vmem:[#allocation5 + $0x10] sm:$0xff]
    %v781 = vld [vmem:[#allocation5 + $0x18] sm:$0xff]
    %v782 = vld [vmem:[#allocation5 + $0x20] sm:$0xff]
    %v783 = vld [vmem:[#allocation5 + $0x28] sm:$0xff]
    %v784 = vld [vmem:[#allocation5 + $0x30] sm:$0xff]
    %v785 = vld [vmem:[#allocation5 + $0x38] sm:$0xff]
    %v786 = vld [vmem:[%s4] sm:$0x1]
    %v788 = vlaneseq
    %v789 = vshrl.u32 %v788, 7
    %v790 = vsub.s32 0, %v789
    %v791 = vrot.slane %v786, %v790
    %793 = vmatprep.subr.bf16.mxu0 0
    %794 = vmatpush1.bf16.msra.mxu0 %v778
    %795 = vmatprep.subr.bf16.mxu0 0
    %796 = vmatpush1.bf16.msra.mxu0 %v779
    %797 = vmatprep.subr.bf16.mxu0 0
    %798 = vmatpush1.bf16.msra.mxu0 %v780
    %799 = vmatprep.subr.bf16.mxu0 0
    %800 = vmatpush1.bf16.msra.mxu0 %v781
    %801 = vmatprep.subr.bf16.mxu0 0
    %802 = vmatpush1.bf16.msra.mxu0 %v782
    %803 = vmatprep.subr.bf16.mxu0 0
    %804 = vmatpush1.bf16.msra.mxu0 %v783
    %805 = vmatprep.subr.bf16.mxu0 0
    %806 = vmatpush1.bf16.msra.mxu0 %v784
    %807 = vmatprep.subr.bf16.mxu0 0
    %808 = vmatpush1.bf16.msra.mxu0 %v785
    %809 = vmatprep.subr.bf16.mxu0 0
    %810 = vmatpush1.bf16.msra.mxu0 0
    %811 = vmatprep.subr.bf16.mxu0 0
    %812 = vmatpush1.bf16.msra.mxu0 0
    %813 = vmatprep.subr.bf16.mxu0 0
    %814 = vmatpush1.bf16.msra.mxu0 0
    %815 = vmatprep.subr.bf16.mxu0 0
    %816 = vmatpush1.bf16.msra.mxu0 0
    %817 = vmatprep.subr.bf16.mxu0 0
    %818 = vmatpush1.bf16.msra.mxu0 0
    %819 = vmatprep.subr.bf16.mxu0 0
    %820 = vmatpush1.bf16.msra.mxu0 0
    %821 = vmatprep.subr.bf16.mxu0 0
    %822 = vmatpush1.bf16.msra.mxu0 0
    %823 = vmatprep.subr.bf16.mxu0 0
    %824 = vmatpush1.bf16.msra.mxu0 0
    %825 = vmatprep.mubr.bf16.mxu0 0
    %826 = vmatmul.mubr.bf16.gmra.mrb[0].mxu0 %v768
    %v827 = vpop.f32.mrb[0].mxu0
    %v828 = vadd.f32 %v791, %v827
    %v829 = vpop.f32.mrb[0].mxu0
    %v830 = vpop.f32.mrb[0].mxu0
    %v831 = vadd.f32 %v791, %v830
    %v832 = vpop.f32.mrb[0].mxu0
    %833 = vmatprep.mubr.bf16.mxu0 0
    %834 = vmatmul.mubr.bf16.gmra.mrb[0].mxu0 %v769
    %v835 = vpop.f32.mrb[0].mxu0
    %v836 = vadd.f32 %v791, %v835
    %v837 = vpop.f32.mrb[0].mxu0
    %v838 = vpop.f32.mrb[0].mxu0
    %v839 = vadd.f32 %v791, %v838
    %v840 = vpop.f32.mrb[0].mxu0
    %841 = vdwg.mxu0
    %842 = vst [vmem:[#allocation10] sm:$0xff] %v828
    %843 = vst [vmem:[#allocation10 + $0x8] sm:$0xff] %v831
    %844 = vst [vmem:[#allocation10 + $0x10] sm:$0xff] %v836
    %845 = vst [vmem:[#allocation10 + $0x18] sm:$0xff] %v839
    // Predicated region
    $region46: #{tpu_custom_call.1} parent=1 // pred_check
      _
    $region47: #{tpu_custom_call.1} parent=1 // pred_check_branch
      %847 = sbr.rel (0) target = $region49
    $region48: #{tpu_custom_call.1} parent=1 // pred_region
      %s848 = sadd.s32 0, 0
      %s849 = smul.u32 4, %s848
      %s851 = ssub.s32 512, 512
      %852 = vsyncadd [#allocation9], %s851
      %s853 = smul.addr %s849, 128
      %s854 = scalar_lea.hbm %s5, %s853
      %s855 = sshll.u32 [#allocation10], 4
      %s856 = int_to_ptr.vmem [resolvable:$true] %s855
      %861 = dma.vmem_to_hbm [thread:$0]  %s856, 512, %s854, [#allocation9], 128, 128, 8
    $region49: #{tpu_custom_call.1} parent=1 // pred_fallthru
      _
    // Predicated region
    $region50: #{tpu_custom_call.1} parent=1 // pred_check
      _
    $region51: #{tpu_custom_call.1} parent=1 // pred_check_branch
      %863 = sbr.rel (0) target = $region53
    $region52: #{tpu_custom_call.1} parent=1 // pred_region
      %864 = dma.done [#allocation9], 512
    $region53: #{tpu_custom_call.1} parent=1 // pred_fallthru
      _
    %865 = vsyncpa [#allocation8], 1
    %866 = vsyncpa [#allocation9], 1
  %867 = vsyncmov [#allocation6]
  %s868 = vpop.sfrf %867
  %p869 = scmp.eq.s32.totalorder %s868, 0
  %p870 = pneg %p869
  %872 = shalt.err (%p870)
  %s873 = scalar_lea.sflag [#allocation6], 1
  %874 = vsyncmov %s873
  %s875 = vpop.sfrf %874
  %p876 = scmp.eq.s32.totalorder %s875, 0
  %p877 = pneg %p876
  %879 = shalt.err (%p877)
  %s880 = scalar_lea.sflag [#allocation6], 2
  %881 = vsyncmov %s880
  %s882 = vpop.sfrf %881
  %p883 = scmp.eq.s32.totalorder %s882, 0
  %p884 = pneg %p883
  %886 = shalt.err (%p884)

</llo_original>
